<compile_context>
chip_gen: v5e
topology: v5e:2x2
jax: 0.10.0
libtpu: 0.0.40
codegen_flags: <defaults>
</compile_context>

<pallas_src>
import functools

import jax
import jax.numpy as jnp
from jax import lax
from jax.experimental import pallas as pl
from jax.experimental.pallas import tpu as pltpu

LN_EPS = 1e-5            # nn.LayerNorm default eps
LANE = 128
SUBLANE = 8
MAX_BATCH_TILE = 1024    # v5e/v6e single-TC: big tiles amortize ~0.35us/step overhead
MEGACORE_SPLIT_BATCH = 512   # padded batch >= this -> force >=2 tiles (v7x megacore)
VMEM_LIMIT_FLOOR = 16 << 20
VMEM_LIMIT_CAP = 48 << 20    # stay safely under v7x's 64 MiB physical VMEM


def _round_up(x, m):
    return (x + m - 1) // m * m


def _layer_norm(h, gamma, beta, mask, d_real, d_pad):
    """LayerNorm over the last axis. Padded lanes of h are exactly zero
    (weights/biases zero-padded), so the mean needs no mask; the variance uses
    one pre-packed 0/1 mask multiply (exact two-pass form, no per-tile iota).
    All math in f32 (v5e has no bf16 VPU/EUP)."""
    inv_n = jnp.float32(1.0 / d_real)
    mean = jnp.sum(h, axis=-1, keepdims=True) * inv_n
    centered = h - mean
    if d_real != d_pad:
        centered = centered * mask
    var = jnp.sum(centered * centered, axis=-1, keepdims=True) * inv_n
    return centered * lax.rsqrt(var + LN_EPS) * gamma + beta


def actor_kernel(x_ref, w1_ref, w2_ref, w3_ref, vec_ref, o_ref, *, dims, pdims):
    """One batch tile: x (TB, p_in_s) -> o (TB, p_out)."""
    _, d1, d2, _ = dims
    p1, p2, p_out = pdims

    def mm(a, w):
        # Weights may already be bf16 (packed host-side); cast only the small
        # activation tile. f32 accumulation on the MXU.
        return jnp.dot(a.astype(w.dtype), w, preferred_element_type=jnp.float32)

    # Packed per-feature f32 vectors (static slices, zero runtime cost):
    # rows: b1, g1, be1, mask1, b2, g2, be2, mask2, b3, (pad...)
    b1 = vec_ref[0:1, 0:p1]
    g1 = vec_ref[1:2, 0:p1]
    be1 = vec_ref[2:3, 0:p1]
    m1 = vec_ref[3:4, 0:p1]
    b2 = vec_ref[4:5, 0:p2]
    g2 = vec_ref[5:6, 0:p2]
    be2 = vec_ref[6:7, 0:p2]
    m2 = vec_ref[7:8, 0:p2]
    b3 = vec_ref[8:9, 0:p_out]

    x = x_ref[...]

    # fc1 -> LayerNorm -> ReLU
    h1 = mm(x, w1_ref[...]) + b1
    h1 = jnp.maximum(_layer_norm(h1, g1, be1, m1, d1, p1), 0.0)

    # fc2 -> LayerNorm -> ReLU
    h2 = mm(h1, w2_ref[...]) + b2
    h2 = jnp.maximum(_layer_norm(h2, g2, be2, m2, d2, p2), 0.0)

    # mu -> tanh (padded lanes are tanh(0) = 0); lane-dense unmasked store.
    out = mm(h2, w3_ref[...]) + b3
    o_ref[...] = jnp.tanh(out).astype(o_ref.dtype)


def _pack_params(params, dims, pdims, p_in_s, w_dtype):
    """Per-layer lane-padded weight blocks (optionally bf16) plus one f32
    (16, n_vec) slab holding biases, gamma, beta, and LN 0/1 masks."""
    d_in, d1, d2, d_out = dims
    p1, p2, p_out = pdims
    n_vec = max(p1, p2, p_out)

    w1 = jnp.zeros((p_in_s, p1), w_dtype).at[:d_in, :d1].set(
        params["w1"].astype(w_dtype))
    w2 = jnp.zeros((p1, p2), w_dtype).at[:d1, :d2].set(
        params["w2"].astype(w_dtype))
    w3 = jnp.zeros((p2, p_out), w_dtype).at[:d2, :d_out].set(
        params["w3"].astype(w_dtype))

    vec = jnp.zeros((2 * SUBLANE, n_vec), jnp.float32)
    vec = vec.at[0, :d1].set(params["b1"])
    vec = vec.at[1, :d1].set(params["g1"])
    vec = vec.at[2, :d1].set(params["beta1"])
    vec = vec.at[3, :d1].set(1.0)           # LN mask for layer 1
    vec = vec.at[4, :d2].set(params["b2"])
    vec = vec.at[5, :d2].set(params["g2"])
    vec = vec.at[6, :d2].set(params["beta2"])
    vec = vec.at[7, :d2].set(1.0)           # LN mask for layer 2
    vec = vec.at[8, :d_out].set(params["b3"])
    return w1, w2, w3, vec


@functools.partial(jax.jit, static_argnames=("use_bf16_mxu",))
def actor_forward(state, params, use_bf16_mxu=False):
    """state: (B, input_dims) f32 -> (B, n_actions) f32.

    use_bf16_mxu=True packs weights in bf16 (host-side) for ~2x MXU throughput
    and half the weight DMA/VMEM on v5e/v6e/v7x; LN/ReLU/tanh stay in f32."""
    B, d_in = state.shape
    d1 = params["w1"].shape[1]
    d2 = params["w2"].shape[1]
    d_out = params["w3"].shape[1]
    dims = (d_in, d1, d2, d_out)
    p1, p2, p_out = (_round_up(d, LANE) for d in (d1, d2, d_out))
    pdims = (p1, p2, p_out)
    p_in_s = _round_up(d_in, SUBLANE)   # input lane-padded only to sublane multiple
    n_vec = max(p1, p2, p_out)

    # Batch tiling: biggest tile <= MAX_BATCH_TILE; once padded batch >= 512,
    # cap the tile so there are >= 2 grid steps (both v7x TensorCores engage).
    b8 = _round_up(B, SUBLANE)
    tb = min(b8, MAX_BATCH_TILE)
    if b8 >= MEGACORE_SPLIT_BATCH:
        tb = min(tb, _round_up((b8 + 1) // 2, SUBLANE))
    pB = _round_up(b8, tb)
    num_tiles = pB // tb

    # Only pad in HBM when strictly necessary (no 128-lane amplification).
    if pB == B and p_in_s == d_in:
        x_in = state
    else:
        x_in = jnp.zeros((pB, p_in_s), jnp.float32).at[:B, :d_in].set(state)

    w_dtype = jnp.bfloat16 if use_bf16_mxu else jnp.float32
    w1, w2, w3, vec = _pack_params(params, dims, pdims, p_in_s, w_dtype)

    # VMEM budget (resident slabs single-buffered, streamed tiles double-buffered).
    wbytes = 2 if use_bf16_mxu else 4
    resident = (p_in_s * p1 + p1 * p2 + p2 * p_out) * wbytes + vec.size * 4
    streamed = 2 * tb * (p_in_s + p_out) * 4
    activ = 4 * tb * max(p1, p2) * 4
    vmem_limit = int(min(max(2 * (resident + streamed + activ) + (4 << 20),
                             VMEM_LIMIT_FLOOR), VMEM_LIMIT_CAP))
    # TODO(synk): if resident slab bytes ever approach ~16 MiB (huge fc dims on
    # v7x), switch to tiling fc1/fc2 over a reduction grid axis instead.

    kernel = functools.partial(actor_kernel, dims=dims, pdims=pdims)

    def resident_spec(shape):
        # Constant block across the grid + single buffer: fetched once, stays
        # VMEM-resident, half the buffering footprint.
        return pl.BlockSpec(shape, lambda i: (0, 0), pipeline_mode=pl.Buffered(1))

    out_padded = pl.pallas_call(
        kernel,
        out_shape=jax.ShapeDtypeStruct((pB, p_out), jnp.float32),
        grid_spec=pltpu.PrefetchScalarGridSpec(
            num_scalar_prefetch=0,
            grid=(num_tiles,),
            in_specs=[
                pl.BlockSpec((tb, p_in_s), lambda i: (i, 0)),   # streamed batch tile
                resident_spec((p_in_s, p1)),                    # w1
                resident_spec((p1, p2)),                        # w2
                resident_spec((p2, p_out)),                     # w3
                resident_spec((2 * SUBLANE, n_vec)),            # biases/gamma/beta/masks
            ],
            out_specs=pl.BlockSpec((tb, p_out), lambda i: (i, 0)),
        ),
        compiler_params=pltpu.CompilerParams(
            dimension_semantics=("parallel",),
            vmem_limit_bytes=vmem_limit),
    )(x_in, w1, w2, w3, vec)

    return out_padded[:B, :d_out]


def init_params(key, input_dims, fc1_dims, fc2_dims, n_actions):
    """Mirrors the module's init (faithfully reproducing its
    1/sqrt(weight.size()[0]) = 1/sqrt(out_features) fan bound as written).
    Weights stored as (in, out) = W^T. LayerNorm affine: gamma=1, beta=0."""
    k = jax.random.split(key, 6)
    f1 = 1.0 / jnp.sqrt(jnp.float32(fc1_dims))
    f2 = 1.0 / jnp.sqrt(jnp.float32(fc2_dims))
    f3 = 0.003

    def u(kk, shape, bound):
        return jax.random.uniform(kk, shape, jnp.float32, -bound, bound)

    return {
        "w1": u(k[0], (input_dims, fc1_dims), f1),
        "b1": u(k[1], (fc1_dims,), f1),
        "g1": jnp.ones((fc1_dims,), jnp.float32),
        "beta1": jnp.zeros((fc1_dims,), jnp.float32),
        "w2": u(k[2], (fc1_dims, fc2_dims), f2),
        "b2": u(k[3], (fc2_dims,), f2),
        "g2": jnp.ones((fc2_dims,), jnp.float32),
        "beta2": jnp.zeros((fc2_dims,), jnp.float32),
        "w3": u(k[4], (fc2_dims, n_actions), f3),
        "b3": u(k[5], (n_actions,), f3),
    }


def reference_forward(state, params):
    def ln(h, g, b):
        mean = h.mean(-1, keepdims=True)
        var = ((h - mean) ** 2).mean(-1, keepdims=True)
        return (h - mean) * lax.rsqrt(var + LN_EPS) * g + b

    h1 = state @ params["w1"] + params["b1"]
    h1 = jnp.maximum(ln(h1, params["g1"], params["beta1"]), 0.0)
    h2 = h1 @ params["w2"] + params["b2"]
    h2 = jnp.maximum(ln(h2, params["g2"], params["beta2"]), 0.0)
    return jnp.tanh(h2 @ params["w3"] + params["b3"])


if __name__ == "__main__":
    # Small shapes consistent with the module: state (B, input_dims) -> (B, n_actions)
    B, INPUT_DIMS, FC1, FC2, N_ACTIONS = 8, 16, 32, 32, 4

    key = jax.random.PRNGKey(0)
    k_params, k_state, k_state2 = jax.random.split(key, 3)
    params = init_params(k_params, INPUT_DIMS, FC1, FC2, N_ACTIONS)
    state = jax.random.normal(k_state, (B, INPUT_DIMS), jnp.float32)

    ref = reference_forward(state, params)

    # f32 weight path (matches the reference closely)
    out = jax.block_until_ready(actor_forward(state, params, use_bf16_mxu=False))
    assert out.shape == (B, N_ACTIONS)
    assert jnp.allclose(out, ref, atol=1e-5, rtol=1e-5)

    # bf16-weight MXU path (f32 accumulation + f32 LN/tanh); ~3 decimal digits
    # of weight precision are traded for throughput -- fine for an RL actor.
    out_bf16 = jax.block_until_ready(actor_forward(state, params, use_bf16_mxu=True))
    assert out_bf16.shape == (B, N_ACTIONS)
    assert jnp.allclose(out_bf16, ref, atol=5e-2)

    # Larger batch: exercises batch padding + >=2 grid steps (v7x both cores).
    B2 = 520
    state2 = jax.random.normal(k_state2, (B2, INPUT_DIMS), jnp.float32)
    ref2 = reference_forward(state2, params)
    out2 = jax.block_until_ready(actor_forward(state2, params, use_bf16_mxu=False))
    assert out2.shape == (B2, N_ACTIONS)
    assert jnp.allclose(out2, ref2, atol=1e-5, rtol=1e-5)

    print("KERNEL_OK")
</pallas_src>

<mosaic_0001>
module attributes {stable_mosaic.version = 11 : i64} {
  func.func @actor_kernel(%arg0: i32, %arg1: memref<8x16xf32, #tpu.memory_space<vmem>>, %arg2: memref<16x128xf32, #tpu.memory_space<vmem>>, %arg3: memref<128x128xf32, #tpu.memory_space<vmem>>, %arg4: memref<128x128xf32, #tpu.memory_space<vmem>>, %arg5: memref<16x128xf32, #tpu.memory_space<vmem>>, %arg6: memref<8x128xf32, #tpu.memory_space<vmem>>) attributes {dimension_semantics = [#tpu.dimension_semantics<parallel>], iteration_bounds = array<i64: 1>, scalar_prefetch = 0 : i64, scratch_operands = 0 : i64, tpu.core_type = #tpu.core_type<tc>, window_params = [{transform_indices = @transform_0, window_bounds = array<i64: 8, 16>}, {pipeline_mode = #tpu.pipeline_mode<synchronous>, transform_indices = @transform_1, window_bounds = array<i64: 16, 128>}, {pipeline_mode = #tpu.pipeline_mode<synchronous>, transform_indices = @transform_2, window_bounds = array<i64: 128, 128>}, {pipeline_mode = #tpu.pipeline_mode<synchronous>, transform_indices = @transform_3, window_bounds = array<i64: 128, 128>}, {pipeline_mode = #tpu.pipeline_mode<synchronous>, transform_indices = @transform_4, window_bounds = array<i64: 16, 128>}, {transform_indices = @transform_5, window_bounds = array<i64: 8, 128>}]} {
    %c0 = arith.constant 0 : index
    %c0_0 = arith.constant 0 : index
    %0 = vector.load %arg5[%c0, %c0_0] : memref<16x128xf32, #tpu.memory_space<vmem>>, vector<1x128xf32>
    %c1 = arith.constant 1 : index
    %c0_1 = arith.constant 0 : index
    %1 = vector.load %arg5[%c1, %c0_1] : memref<16x128xf32, #tpu.memory_space<vmem>>, vector<1x128xf32>
    %c2 = arith.constant 2 : index
    %c0_2 = arith.constant 0 : index
    %2 = vector.load %arg5[%c2, %c0_2] : memref<16x128xf32, #tpu.memory_space<vmem>>, vector<1x128xf32>
    %c3 = arith.constant 3 : index
    %c0_3 = arith.constant 0 : index
    %3 = vector.load %arg5[%c3, %c0_3] : memref<16x128xf32, #tpu.memory_space<vmem>>, vector<1x128xf32>
    %c4 = arith.constant 4 : index
    %c0_4 = arith.constant 0 : index
    %4 = vector.load %arg5[%c4, %c0_4] : memref<16x128xf32, #tpu.memory_space<vmem>>, vector<1x128xf32>
    %c5 = arith.constant 5 : index
    %c0_5 = arith.constant 0 : index
    %5 = vector.load %arg5[%c5, %c0_5] : memref<16x128xf32, #tpu.memory_space<vmem>>, vector<1x128xf32>
    %c6 = arith.constant 6 : index
    %c0_6 = arith.constant 0 : index
    %6 = vector.load %arg5[%c6, %c0_6] : memref<16x128xf32, #tpu.memory_space<vmem>>, vector<1x128xf32>
    %c7 = arith.constant 7 : index
    %c0_7 = arith.constant 0 : index
    %7 = vector.load %arg5[%c7, %c0_7] : memref<16x128xf32, #tpu.memory_space<vmem>>, vector<1x128xf32>
    %c8 = arith.constant 8 : index
    %c0_8 = arith.constant 0 : index
    %8 = vector.load %arg5[%c8, %c0_8] : memref<16x128xf32, #tpu.memory_space<vmem>>, vector<1x128xf32>
    %c0_9 = arith.constant 0 : index
    %c0_10 = arith.constant 0 : index
    %9 = vector.load %arg1[%c0_9, %c0_10] : memref<8x16xf32, #tpu.memory_space<vmem>>, vector<8x16xf32>
    %c0_11 = arith.constant 0 : index
    %c0_12 = arith.constant 0 : index
    %10 = vector.load %arg2[%c0_11, %c0_12] : memref<16x128xf32, #tpu.memory_space<vmem>>, vector<16x128xf32>
    %cst = arith.constant dense<0.000000e+00> : vector<8x128xf32>
    %11 = tpu.matmul %9, %10, %cst {dimension_numbers = #tpu.dot_dimension_numbers<[1], [0], [0], [1], [0, 0, 1, 1], [], []>} : vector<8x16xf32>, vector<16x128xf32>, vector<8x128xf32> -> vector<8x128xf32>
    %12 = vector.broadcast %0 : vector<1x128xf32> to vector<8x128xf32>
    %13 = arith.addf %11, %12 : vector<8x128xf32>
    %cst_13 = arith.constant dense<0.000000e+00> : vector<8xf32>
    %14 = vector.multi_reduction <add>, %13, %cst_13 [1] : vector<8x128xf32> to vector<8xf32>
    %15 = vector.shape_cast %14 : vector<8xf32> to vector<8x1xf32>
    %cst_14 = arith.constant 3.125000e-02 : f32
    %16 = vector.broadcast %cst_14 : f32 to vector<8x1xf32>
    %17 = arith.mulf %15, %16 : vector<8x1xf32>
    %18 = vector.broadcast %17 : vector<8x1xf32> to vector<8x128xf32>
    %19 = arith.subf %13, %18 : vector<8x128xf32>
    %20 = vector.broadcast %3 : vector<1x128xf32> to vector<8x128xf32>
    %21 = arith.mulf %19, %20 : vector<8x128xf32>
    %22 = arith.mulf %21, %21 : vector<8x128xf32>
    %cst_15 = arith.constant dense<0.000000e+00> : vector<8xf32>
    %23 = vector.multi_reduction <add>, %22, %cst_15 [1] : vector<8x128xf32> to vector<8xf32>
    %24 = vector.shape_cast %23 : vector<8xf32> to vector<8x1xf32>
    %cst_16 = arith.constant 3.125000e-02 : f32
    %25 = vector.broadcast %cst_16 : f32 to vector<8x1xf32>
    %26 = arith.mulf %24, %25 : vector<8x1xf32>
    %cst_17 = arith.constant 9.99999974E-6 : f32
    %27 = vector.broadcast %cst_17 : f32 to vector<8x1xf32>
    %28 = arith.addf %26, %27 : vector<8x1xf32>
    %29 = math.rsqrt %28 : vector<8x1xf32>
    %30 = vector.broadcast %29 : vector<8x1xf32> to vector<8x128xf32>
    %31 = arith.mulf %21, %30 : vector<8x128xf32>
    %32 = vector.broadcast %1 : vector<1x128xf32> to vector<8x128xf32>
    %33 = arith.mulf %31, %32 : vector<8x128xf32>
    %34 = vector.broadcast %2 : vector<1x128xf32> to vector<8x128xf32>
    %35 = arith.addf %33, %34 : vector<8x128xf32>
    %cst_18 = arith.constant 0.000000e+00 : f32
    %36 = vector.broadcast %cst_18 : f32 to vector<8x128xf32>
    %37 = arith.maximumf %35, %36 : vector<8x128xf32>
    %c0_19 = arith.constant 0 : index
    %c0_20 = arith.constant 0 : index
    %38 = vector.load %arg3[%c0_19, %c0_20] : memref<128x128xf32, #tpu.memory_space<vmem>>, vector<128x128xf32>
    %cst_21 = arith.constant dense<0.000000e+00> : vector<8x128xf32>
    %39 = tpu.matmul %37, %38, %cst_21 {dimension_numbers = #tpu.dot_dimension_numbers<[1], [0], [0], [1], [0, 0, 1, 1], [], []>} : vector<8x128xf32>, vector<128x128xf32>, vector<8x128xf32> -> vector<8x128xf32>
    %40 = vector.broadcast %4 : vector<1x128xf32> to vector<8x128xf32>
    %41 = arith.addf %39, %40 : vector<8x128xf32>
    %cst_22 = arith.constant dense<0.000000e+00> : vector<8xf32>
    %42 = vector.multi_reduction <add>, %41, %cst_22 [1] : vector<8x128xf32> to vector<8xf32>
    %43 = vector.shape_cast %42 : vector<8xf32> to vector<8x1xf32>
    %cst_23 = arith.constant 3.125000e-02 : f32
    %44 = vector.broadcast %cst_23 : f32 to vector<8x1xf32>
    %45 = arith.mulf %43, %44 : vector<8x1xf32>
    %46 = vector.broadcast %45 : vector<8x1xf32> to vector<8x128xf32>
    %47 = arith.subf %41, %46 : vector<8x128xf32>
    %48 = vector.broadcast %7 : vector<1x128xf32> to vector<8x128xf32>
    %49 = arith.mulf %47, %48 : vector<8x128xf32>
    %50 = arith.mulf %49, %49 : vector<8x128xf32>
    %cst_24 = arith.constant dense<0.000000e+00> : vector<8xf32>
    %51 = vector.multi_reduction <add>, %50, %cst_24 [1] : vector<8x128xf32> to vector<8xf32>
    %52 = vector.shape_cast %51 : vector<8xf32> to vector<8x1xf32>
    %cst_25 = arith.constant 3.125000e-02 : f32
    %53 = vector.broadcast %cst_25 : f32 to vector<8x1xf32>
    %54 = arith.mulf %52, %53 : vector<8x1xf32>
    %cst_26 = arith.constant 9.99999974E-6 : f32
    %55 = vector.broadcast %cst_26 : f32 to vector<8x1xf32>
    %56 = arith.addf %54, %55 : vector<8x1xf32>
    %57 = math.rsqrt %56 : vector<8x1xf32>
    %58 = vector.broadcast %57 : vector<8x1xf32> to vector<8x128xf32>
    %59 = arith.mulf %49, %58 : vector<8x128xf32>
    %60 = vector.broadcast %5 : vector<1x128xf32> to vector<8x128xf32>
    %61 = arith.mulf %59, %60 : vector<8x128xf32>
    %62 = vector.broadcast %6 : vector<1x128xf32> to vector<8x128xf32>
    %63 = arith.addf %61, %62 : vector<8x128xf32>
    %cst_27 = arith.constant 0.000000e+00 : f32
    %64 = vector.broadcast %cst_27 : f32 to vector<8x128xf32>
    %65 = arith.maximumf %63, %64 : vector<8x128xf32>
    %c0_28 = arith.constant 0 : index
    %c0_29 = arith.constant 0 : index
    %66 = vector.load %arg4[%c0_28, %c0_29] : memref<128x128xf32, #tpu.memory_space<vmem>>, vector<128x128xf32>
    %cst_30 = arith.constant dense<0.000000e+00> : vector<8x128xf32>
    %67 = tpu.matmul %65, %66, %cst_30 {dimension_numbers = #tpu.dot_dimension_numbers<[1], [0], [0], [1], [0, 0, 1, 1], [], []>} : vector<8x128xf32>, vector<128x128xf32>, vector<8x128xf32> -> vector<8x128xf32>
    %68 = vector.broadcast %8 : vector<1x128xf32> to vector<8x128xf32>
    %69 = arith.addf %67, %68 : vector<8x128xf32>
    %70 = math.tanh %69 : vector<8x128xf32>
    %c0_31 = arith.constant 0 : index
    %c0_32 = arith.constant 0 : index
    %71 = vector.load %arg6[%c0_31, %c0_32] : memref<8x128xf32, #tpu.memory_space<vmem>>, vector<8x128xf32>
    tpu.vector_store %arg6[%c0_31, %c0_32], %70 {strides = array<i32>} : memref<8x128xf32, #tpu.memory_space<vmem>>, vector<8x128xf32>,
    return
  }
  func.func @transform_0(%arg0: i32) -> (i32, i32) {
    %c0_i32 = arith.constant 0 : i32
    %c0_i32_0 = arith.constant 0 : i32
    return %arg0, %c0_i32 : i32, i32
  }
  func.func @transform_1(%arg0: i32) -> (i32, i32) {
    %c0_i32 = arith.constant 0 : i32
    %c0_i32_0 = arith.constant 0 : i32
    %c0_i32_1 = arith.constant 0 : i32
    return %c0_i32, %c0_i32_0 : i32, i32
  }
  func.func @transform_2(%arg0: i32) -> (i32, i32) {
    %c0_i32 = arith.constant 0 : i32
    %c0_i32_0 = arith.constant 0 : i32
    %c0_i32_1 = arith.constant 0 : i32
    return %c0_i32, %c0_i32_0 : i32, i32
  }
  func.func @transform_3(%arg0: i32) -> (i32, i32) {
    %c0_i32 = arith.constant 0 : i32
    %c0_i32_0 = arith.constant 0 : i32
    %c0_i32_1 = arith.constant 0 : i32
    return %c0_i32, %c0_i32_0 : i32, i32
  }
  func.func @transform_4(%arg0: i32) -> (i32, i32) {
    %c0_i32 = arith.constant 0 : i32
    %c0_i32_0 = arith.constant 0 : i32
    %c0_i32_1 = arith.constant 0 : i32
    return %c0_i32, %c0_i32_0 : i32, i32
  }
  func.func @transform_5(%arg0: i32) -> (i32, i32) {
    %c0_i32 = arith.constant 0 : i32
    %c0_i32_0 = arith.constant 0 : i32
    return %arg0, %c0_i32 : i32, i32
  }
}

</mosaic_0001>

<llo_original>
// kernel: actor_forward.1
$region0: #{actor_forward.1}
  #allocation0 [shape = 'u32[]', space=smem, size = 0x4, offset = 0x4, fixed_abs, tag = 'smem constant byte address 0x4 - core index']
  #allocation1 [shape = 'u32[72,128]{1,0:T(1,128)}', space=vmem, size = 0x9000, scoped, tag = 'internal scratch']
  %s0 = inlined_call_operand.vmem [shape: f32[8,16], index: 0, kind: input, shape index: {}]
  %s1 = inlined_call_operand.vmem [shape: f32[16,128], index: 1, kind: input, shape index: {}]
  %s2 = inlined_call_operand.vmem [shape: f32[128,128], index: 2, kind: input, shape index: {}]
  %s3 = inlined_call_operand.vmem [shape: f32[128,128], index: 3, kind: input, shape index: {}]
  %s4 = inlined_call_operand.vmem [shape: f32[16,128], index: 4, kind: input, shape index: {}]
  %s5 = inlined_call_operand.vmem [shape: f32[8,128], index: 5, kind: output, shape index: {}]
  %s6 = sld [smem:[#allocation0]]
  $region30: #{actor_forward.1} parent=0
    _
  %s8 = ssub.s32 1, %s6
  %s9 = scalar_select 0, %s8, %s6
  // Predicated region
  $region2: #{actor_forward.1} parent=0 // pred_check
    _
  $region3: #{actor_forward.1} parent=0 // pred_check_branch
    %11 = sbr.rel (0) target = $region5
  $region4: #{actor_forward.1} parent=0 // pred_region
    _
  $region5: #{actor_forward.1} parent=0 // pred_fallthru
    _
  // Predicated region
  $region6: #{actor_forward.1} parent=0 // pred_check
    _
  $region7: #{actor_forward.1} parent=0 // pred_check_branch
    %13 = sbr.rel (0) target = $region9
  $region8: #{actor_forward.1} parent=0 // pred_region
    _
  $region9: #{actor_forward.1} parent=0 // pred_fallthru
    _
  // Predicated region
  $region10: #{actor_forward.1} parent=0 // pred_check
    _
  $region11: #{actor_forward.1} parent=0 // pred_check_branch
    %15 = sbr.rel (0) target = $region13
  $region12: #{actor_forward.1} parent=0 // pred_region
    _
  $region13: #{actor_forward.1} parent=0 // pred_fallthru
    _
  // Predicated region
  $region14: #{actor_forward.1} parent=0 // pred_check
    _
  $region15: #{actor_forward.1} parent=0 // pred_check_branch
    %17 = sbr.rel (0) target = $region17
  $region16: #{actor_forward.1} parent=0 // pred_region
    _
  $region17: #{actor_forward.1} parent=0 // pred_fallthru
    _
  // Predicated region
  $region18: #{actor_forward.1} parent=0 // pred_check
    _
  $region19: #{actor_forward.1} parent=0 // pred_check_branch
    %19 = sbr.rel (0) target = $region21
  $region20: #{actor_forward.1} parent=0 // pred_region
    _
  $region21: #{actor_forward.1} parent=0 // pred_fallthru
    _
  %v20 = vld [vmem:[%s4] sm:$0x1]
  %v21 = vld [vmem:[%s4 + $0x1] sm:$0x1]
  %v22 = vld [vmem:[%s4 + $0x2] sm:$0x1]
  %v23 = vld [vmem:[%s4 + $0x3] sm:$0x1]
  %v24 = vld [vmem:[%s4 + $0x4] sm:$0x1]
  %v25 = vld [vmem:[%s4 + $0x5] sm:$0x1]
  %v26 = vld [vmem:[%s4 + $0x6] sm:$0x1]
  %v27 = vld [vmem:[%s4 + $0x7] sm:$0x1]
  %v28 = vld [vmem:[%s4 + $0x8] sm:$0x1]
  %v29 = vld [vmem:[%s0] sm:$0xff]
  %v30 = vld [vmem:[%s1] sm:$0xff]
  %v31 = vld [vmem:[%s1 + $0x8] sm:$0xff]
  %v32 = vperm.slane %v20, 0
  %vm33 = vcmask 130048
  %v35 = vsel %vm33, %v29, 0
  %37 = vmatpush.msra.mxu0 0.0
  %38 = vmatpush.msra.mxu0 0.0
  %39 = vmatpush.msra.mxu0 0.0
  %40 = vmatpush.msra.mxu0 0.0
  %41 = vmatpush.msra.mxu0 0.0
  %42 = vmatpush.msra.mxu0 0.0
  %43 = vmatpush.msra.mxu0 0.0
  %44 = vmatpush.msra.mxu0 0.0
  %45 = vmatpush.msra.mxu0 0.0
  %46 = vmatpush.msra.mxu0 0.0
  %47 = vmatpush.msra.mxu0 0.0
  %48 = vmatpush.msra.mxu0 0.0
  %49 = vmatpush.msra.mxu0 0.0
  %50 = vmatpush.msra.mxu0 0.0
  %51 = vmatpush.msra.mxu0 %v31
  %52 = vmatpush.msra.mxu0 %v30
  %53 = vmatmul.f32.gmra.mxu0 %v35
  %v54 = vpop.f32.mrf.mxu0
  %v55 = vadd.f32 %v32, %v54
  %56 = vdwg.mxu0
  %57 = vadd.xlane.f32.xlu0 %v55
  %v58 = vpop.xlane.xlu0 %57
  %v59 = vmul.f32 %v58, 0.03125
  %v60 = vsub.f32 %v55, %v59
  %v61 = vperm.slane %v23, 0
  %v62 = vmul.f32 %v60, %v61
  %v63 = vmul.f32 %v62, %v62
  %64 = vadd.xlane.f32.xlu0 %v63
  %v65 = vpop.xlane.xlu0 %64
  %v66 = vmul.f32 %v65, 0.03125
  %v67 = vadd.f32 %v66, 1e-05
  %v68 = vrsqrt.pop %v67
  %v69 = vmul.f32 %v68, %v67
  %v70 = vmul.f32 %v69, %v68
  %v71 = vmul.f32 0.5, %v70
  %v72 = vsub.f32 1.5, %v71
  %v73 = vmul.f32 %v68, %v72
  %vm74 = vweird.f32 %v67
  %vm75 = vweird.f32 %v68
  %vm76 = vmor %vm74, %vm75
  %v77 = vsel %vm76, %v68, %v73
  %v78 = vmul.f32 %v62, %v77
  %v79 = vperm.slane %v21, 0
  %v80 = vmul.f32 %v78, %v79
  %v81 = vperm.slane %v22, 0
  %v82 = vadd.f32 %v80, %v81
  %v83 = vmax.f32 %v82, 0.0
  %v84 = vld [vmem:[%s2] sm:$0xff]
  %v85 = vld [vmem:[%s2 + $0x8] sm:$0xff]
  %v86 = vld [vmem:[%s2 + $0x10] sm:$0xff]
  %v87 = vld [vmem:[%s2 + $0x18] sm:$0xff]
  %v88 = vld [vmem:[%s2 + $0x20] sm:$0xff]
  %v89 = vld [vmem:[%s2 + $0x28] sm:$0xff]
  %v90 = vld [vmem:[%s2 + $0x30] sm:$0xff]
  %v91 = vld [vmem:[%s2 + $0x38] sm:$0xff]
  %v92 = vld [vmem:[%s2 + $0x40] sm:$0xff]
  %v93 = vld [vmem:[%s2 + $0x48] sm:$0xff]
  %v94 = vld [vmem:[%s2 + $0x50] sm:$0xff]
  %v95 = vld [vmem:[%s2 + $0x58] sm:$0xff]
  %v96 = vld [vmem:[%s2 + $0x60] sm:$0xff]
  %v97 = vld [vmem:[%s2 + $0x68] sm:$0xff]
  %v98 = vld [vmem:[%s2 + $0x70] sm:$0xff]
  %v99 = vld [vmem:[%s2 + $0x78] sm:$0xff]
  %v100 = vperm.slane %v24, 0
  %101 = vmatpush.msra.mxu0 %v99
  %102 = vmatpush.msra.mxu0 %v98
  %103 = vmatpush.msra.mxu0 %v97
  %104 = vmatpush.msra.mxu0 %v96
  %105 = vmatpush.msra.mxu0 %v95
  %106 = vmatpush.msra.mxu0 %v94
  %107 = vmatpush.msra.mxu0 %v93
  %108 = vmatpush.msra.mxu0 %v92
  %109 = vmatpush.msra.mxu0 %v91
  %110 = vmatpush.msra.mxu0 %v90
  %111 = vmatpush.msra.mxu0 %v89
  %112 = vmatpush.msra.mxu0 %v88
  %113 = vmatpush.msra.mxu0 %v87
  %114 = vmatpush.msra.mxu0 %v86
  %115 = vmatpush.msra.mxu0 %v85
  %116 = vmatpush.msra.mxu0 %v84
  %117 = vmatmul.f32.gmra.mxu0 %v83
  %v118 = vpop.f32.mrf.mxu0
  %v119 = vadd.f32 %v100, %v118
  %120 = vdwg.mxu0
  %121 = vadd.xlane.f32.xlu0 %v119
  %v122 = vpop.xlane.xlu0 %121
  %v123 = vmul.f32 %v122, 0.03125
  %v124 = vsub.f32 %v119, %v123
  %v125 = vperm.slane %v27, 0
  %v126 = vmul.f32 %v124, %v125
  %v127 = vmul.f32 %v126, %v126
  %128 = vadd.xlane.f32.xlu0 %v127
  %v129 = vpop.xlane.xlu0 %128
  %v130 = vmul.f32 %v129, 0.03125
  %v131 = vadd.f32 %v130, 1e-05
  %v132 = vrsqrt.pop %v131
  %v133 = vmul.f32 %v132, %v131
  %v134 = vmul.f32 %v133, %v132
  %v135 = vmul.f32 0.5, %v134
  %v136 = vsub.f32 1.5, %v135
  %v137 = vmul.f32 %v132, %v136
  %vm138 = vweird.f32 %v131
  %vm139 = vweird.f32 %v132
  %vm140 = vmor %vm138, %vm139
  %v141 = vsel %vm140, %v132, %v137
  %v142 = vmul.f32 %v126, %v141
  %v143 = vperm.slane %v25, 0
  %v144 = vmul.f32 %v142, %v143
  %v145 = vperm.slane %v26, 0
  %v146 = vadd.f32 %v144, %v145
  %v147 = vmax.f32 %v146, 0.0
  %v148 = vld [vmem:[%s3] sm:$0xff]
  %v149 = vld [vmem:[%s3 + $0x8] sm:$0xff]
  %v150 = vld [vmem:[%s3 + $0x10] sm:$0xff]
  %v151 = vld [vmem:[%s3 + $0x18] sm:$0xff]
  %v152 = vld [vmem:[%s3 + $0x20] sm:$0xff]
  %v153 = vld [vmem:[%s3 + $0x28] sm:$0xff]
  %v154 = vld [vmem:[%s3 + $0x30] sm:$0xff]
  %v155 = vld [vmem:[%s3 + $0x38] sm:$0xff]
  %v156 = vld [vmem:[%s3 + $0x40] sm:$0xff]
  %v157 = vld [vmem:[%s3 + $0x48] sm:$0xff]
  %v158 = vld [vmem:[%s3 + $0x50] sm:$0xff]
  %v159 = vld [vmem:[%s3 + $0x58] sm:$0xff]
  %v160 = vld [vmem:[%s3 + $0x60] sm:$0xff]
  %v161 = vld [vmem:[%s3 + $0x68] sm:$0xff]
  %v162 = vld [vmem:[%s3 + $0x70] sm:$0xff]
  %v163 = vld [vmem:[%s3 + $0x78] sm:$0xff]
  %v164 = vperm.slane %v28, 0
  %165 = vmatpush.msra.mxu0 %v163
  %166 = vmatpush.msra.mxu0 %v162
  %167 = vmatpush.msra.mxu0 %v161
  %168 = vmatpush.msra.mxu0 %v160
  %169 = vmatpush.msra.mxu0 %v159
  %170 = vmatpush.msra.mxu0 %v158
  %171 = vmatpush.msra.mxu0 %v157
  %172 = vmatpush.msra.mxu0 %v156
  %173 = vmatpush.msra.mxu0 %v155
  %174 = vmatpush.msra.mxu0 %v154
  %175 = vmatpush.msra.mxu0 %v153
  %176 = vmatpush.msra.mxu0 %v152
  %177 = vmatpush.msra.mxu0 %v151
  %178 = vmatpush.msra.mxu0 %v150
  %179 = vmatpush.msra.mxu0 %v149
  %180 = vmatpush.msra.mxu0 %v148
  %181 = vmatmul.f32.gmra.mxu0 %v147
  %v182 = vpop.f32.mrf.mxu0
  %v183 = vadd.f32 %v164, %v182
  %184 = vdwg.mxu0
  %v185 = vtanh.pop %v183
  %186 = vst [vmem:[%s5] sm:$0xff] %v185
  // Predicated region
  $region22: #{actor_forward.1} parent=0 // pred_check
    _
  $region23: #{actor_forward.1} parent=0 // pred_check_branch
    %188 = sbr.rel (0) target = $region25
  $region24: #{actor_forward.1} parent=0 // pred_region
    _
  $region25: #{actor_forward.1} parent=0 // pred_fallthru
    _
  // Predicated region
  $region26: #{actor_forward.1} parent=0 // pred_check
    _
  $region27: #{actor_forward.1} parent=0 // pred_check_branch
    %190 = sbr.rel (0) target = $region29
  $region28: #{actor_forward.1} parent=0 // pred_region
    _
  $region29: #{actor_forward.1} parent=0 // pred_fallthru
    _

</llo_original>
